<compile_context>
chip_gen: v7x
topology: tpu7x:2x2x1
jax: 0.10.0
libtpu: 0.0.40
codegen_flags: <defaults>
</compile_context>

<pallas_src>
import numpy as np
import jax
import jax.numpy as jnp
from jax.experimental import pallas as pl
from jax.experimental.pallas import tpu as pltpu

_EPS = 1e-5
_BLOCK_BUDGET = 3 * 1024 * 1024     # ~3 MiB of (lane-padded) data per grid step


# ----------------------------- kernels ---------------------------------------

def _ln_rows_kernel(x_ref, w_ref, o_ref):
    """Channels-last layout. x: (BLK, C), w: (1, C). Normalize over the last axis."""
    x = x_ref[...].astype(jnp.float32)
    mu = jnp.mean(x, axis=-1, keepdims=True)
    var = jnp.mean((x - mu) * (x - mu), axis=-1, keepdims=True)   # unbiased=False
    # BiasFree: scale x itself (no mean subtraction of the output), no bias.
    y = x * jax.lax.rsqrt(var + _EPS)
    o_ref[...] = (y * w_ref[...].astype(jnp.float32)).astype(o_ref.dtype)


def _ln_cfirst_kernel(x_ref, w_ref, o_ref):
    """Channel-first (lane-dense). x: (1, C, NBLK), w: (1, C, 1). Reduce over C.

    The normalized axis (C) sits in sublanes; tokens fill the 128-wide lane axis, so
    loads/stores are full unmasked vregs regardless of how small C is (e.g. 48).
    """
    x = x_ref[...].astype(jnp.float32)
    mu = jnp.mean(x, axis=1, keepdims=True)
    var = jnp.mean((x - mu) * (x - mu), axis=1, keepdims=True)    # unbiased=False
    y = x * jax.lax.rsqrt(var + _EPS)
    o_ref[...] = (y * w_ref[...].astype(jnp.float32)).astype(o_ref.dtype)


# ----------------------------- tiling helpers ---------------------------------

def _round_up(x, m):
    return ((x + m - 1) // m) * m


def _compiler_params(block_bytes, semantics):
    # in + out double-buffered plus f32 compute temporaries, with slack; <=48 MiB on v7x.
    vmem = int(min(48 * 1024 * 1024, max(16 * 1024 * 1024, 12 * block_bytes)))
    return pltpu.CompilerParams(dimension_semantics=semantics, vmem_limit_bytes=vmem)


def _row_block(rows, c, itemsize):
    """Rows per block for the channels-last kernel (multiple of 8, <= rows)."""
    if rows <= 8:
        return rows                                    # tiny: single full-extent block
    c_pad = _round_up(c, 128)                          # lane padding inside VMEM
    blk = max(8, (_BLOCK_BUDGET // (c_pad * itemsize)) // 8 * 8)
    cap = max(8, ((rows // 2) // 8) * 8)               # guarantee >=2 grid steps
    return min(blk, cap)


def _token_block(B, C, N, itemsize):
    """Tokens per block for the channel-first kernel (multiple of 128, <= N)."""
    if N <= 128:
        return N                                       # tiny: single full-extent block
    nblk = _BLOCK_BUDGET // (C * itemsize)
    nblk = max(128, (nblk // 128) * 128)
    cap = (N // 128) * 128                             # largest lane-multiple <= N
    if B == 1:
        cap = max(128, ((N // 2) // 128) * 128)        # guarantee >=2 grid steps
    return min(nblk, cap)


# ----------------------------- wrappers ---------------------------------------

def biasfree_layernorm_cfirst(x, weight):
    """Lane-dense path for channel-first data.

    x: (B, C, N) with N = H*W (NCHW flattened — PRNet's native layout), weight: (C,).
    Normalizes each (b, n) column over C; identical math to the channels-last form.
    """
    B, C, N = x.shape
    itemsize = jnp.dtype(x.dtype).itemsize
    nblk = _token_block(B, C, N, itemsize)
    block_bytes = C * nblk * itemsize
    grid = (B, pl.cdiv(N, nblk))                       # last token block may be partial

    return pl.pallas_call(
        _ln_cfirst_kernel,
        out_shape=jax.ShapeDtypeStruct((B, C, N), x.dtype),
        grid=grid,
        in_specs=[
            pl.BlockSpec((1, C, nblk), lambda b, j: (b, 0, j)),
            pl.BlockSpec((1, C, 1), lambda b, j: (0, 0, 0)),   # weight resident in VMEM
        ],
        out_specs=pl.BlockSpec((1, C, nblk), lambda b, j: (b, 0, j)),
        compiler_params=_compiler_params(block_bytes, ("parallel", "parallel")),
    )(x, weight.reshape(1, C, 1))


def biasfree_layernorm_nchw(x, weight):
    """PRNet use-site layout: x (B, C, H, W), per-pixel normalization over C."""
    Bb, C, H, W = x.shape
    out = biasfree_layernorm_cfirst(x.reshape(Bb, C, H * W), weight)
    return out.reshape(Bb, C, H, W)


def biasfree_layernorm(x, weight):
    """BiasFree LayerNorm over the last axis (faithful to the PyTorch module).

    x: (..., C), weight: (C,). Small-C inputs are routed through the lane-dense
    channel-first kernel (via a layout swap) so stores are full 128-lane vregs.
    """
    orig_shape = x.shape
    C = orig_shape[-1]
    rows = int(np.prod(orig_shape[:-1])) if len(orig_shape) > 1 else 1
    x2 = x.reshape(rows, C)

    if C < 128 and rows >= 128:
        # Lane-dense route: small normalized axis -> sublanes, independent rows -> lanes.
        x_cf = jnp.swapaxes(x2, 0, 1)[None]            # (1, C, rows)
        out_cf = biasfree_layernorm_cfirst(x_cf, weight)
        return jnp.swapaxes(out_cf[0], 0, 1).reshape(orig_shape)

    itemsize = jnp.dtype(x.dtype).itemsize
    blk = _row_block(rows, C, itemsize)
    block_bytes = blk * _round_up(C, 128) * itemsize
    grid = (pl.cdiv(rows, blk),)                       # last row block may be partial

    out = pl.pallas_call(
        _ln_rows_kernel,
        out_shape=jax.ShapeDtypeStruct((rows, C), x.dtype),
        grid=grid,
        in_specs=[
            pl.BlockSpec((blk, C), lambda i: (i, 0)),  # row-tiled, double-buffered
            pl.BlockSpec((1, C), lambda i: (0, 0)),    # weight resident in VMEM
        ],
        out_specs=pl.BlockSpec((blk, C), lambda i: (i, 0)),
        compiler_params=_compiler_params(block_bytes, ("parallel",)),
    )(x2, weight.reshape(1, C))
    return out.reshape(orig_shape)


# ----------------------------- main -------------------------------------------

if __name__ == "__main__":
    key = jax.random.PRNGKey(0)
    k1, k2, k3, k4 = jax.random.split(key, 4)

    # PRNet/Restormer-style: dim=48, 16x16 feature map, channels-last tokens.
    B, H, W, C = 2, 16, 16, 48
    x = jax.random.normal(k1, (B, H * W, C), jnp.float32)
    w = 1.0 + 0.1 * jax.random.normal(k2, (C,), jnp.float32)

    # Pure-JAX reference matching the PyTorch module exactly (unbiased=False).
    ref = x / jnp.sqrt(jnp.var(x, axis=-1, keepdims=True) + _EPS) * w

    # 1) Faithful channels-last entry point (routes to the lane-dense kernel for C<128).
    out = jax.block_until_ready(jax.jit(biasfree_layernorm)(x, w))
    assert out.shape == x.shape, out.shape
    assert bool(jnp.all(jnp.isfinite(out)))
    err = float(jnp.max(jnp.abs(out - ref)))
    assert err < 1e-4, err

    # 2) Channel-first (NCHW) fast path — PRNet's native layout.
    x_nchw = jnp.transpose(x, (0, 2, 1)).reshape(B, C, H, W)
    out_nchw = jax.block_until_ready(jax.jit(biasfree_layernorm_nchw)(x_nchw, w))
    ref_nchw = jnp.transpose(ref, (0, 2, 1)).reshape(B, C, H, W)
    err_cf = float(jnp.max(jnp.abs(out_nchw - ref_nchw)))
    assert err_cf < 1e-4, err_cf

    # 3) Wide-channel path (C >= 128) with a partial last row block (no jnp.pad).
    xw = jax.random.normal(k3, (148, 256), jnp.float32)
    ww = 1.0 + 0.1 * jax.random.normal(k4, (256,), jnp.float32)
    refw = xw / jnp.sqrt(jnp.var(xw, axis=-1, keepdims=True) + _EPS) * ww
    outw = jax.block_until_ready(jax.jit(biasfree_layernorm)(xw, ww))
    err_w = float(jnp.max(jnp.abs(outw - refw)))
    assert err_w < 1e-4, err_w

    # 4) Channel-first path with N not a multiple of 128 (partial lane block).
    xn = jax.random.normal(k3, (1, C, 300), jnp.float32)
    refn = xn / jnp.sqrt(jnp.var(xn, axis=1, keepdims=True) + _EPS) * w.reshape(1, C, 1)
    outn = jax.block_until_ready(jax.jit(biasfree_layernorm_cfirst)(xn, w))
    err_n = float(jnp.max(jnp.abs(outn - refn)))
    assert err_n < 1e-4, err_n

    print("KERNEL_OK")
</pallas_src>

<mosaic_0001>
module attributes {stable_mosaic.version = 11 : i64} {
  func.func @_ln_cfirst_kernel(%arg0: i32, %arg1: i32, %arg2: memref<1x48x256xf32, #tpu.memory_space<vmem>>, %arg3: memref<1x48x1xf32, #tpu.memory_space<vmem>>, %arg4: memref<1x48x256xf32, #tpu.memory_space<vmem>>) attributes {dimension_semantics = [#tpu.dimension_semantics<parallel>, #tpu.dimension_semantics<parallel>], iteration_bounds = array<i64: 1, 2>, scalar_prefetch = 0 : i64, scratch_operands = 0 : i64, tpu.core_type = #tpu.core_type<tc>, window_params = [{transform_indices = @transform_0, window_bounds = array<i64: 1, 48, 256>}, {pipeline_mode = #tpu.pipeline_mode<synchronous>, transform_indices = @transform_1, window_bounds = array<i64: 1, 48, 1>}, {transform_indices = @transform_2, window_bounds = array<i64: 1, 48, 256>}]} {
    %c0 = arith.constant 0 : index
    %c0_0 = arith.constant 0 : index
    %c0_1 = arith.constant 0 : index
    %0 = vector.load %arg2[%c0, %c0_0, %c0_1] : memref<1x48x256xf32, #tpu.memory_space<vmem>>, vector<1x48x256xf32>
    %cst = arith.constant dense<0.000000e+00> : vector<1x256xf32>
    %1 = vector.multi_reduction <add>, %0, %cst [1] : vector<1x48x256xf32> to vector<1x256xf32>
    %2 = vector.shape_cast %1 : vector<1x256xf32> to vector<1x1x256xf32>
    %cst_2 = arith.constant 4.800000e+01 : f32
    %3 = vector.broadcast %cst_2 : f32 to vector<1x1x256xf32>
    %4 = arith.divf %2, %3 : vector<1x1x256xf32>
    %5 = vector.broadcast %4 : vector<1x1x256xf32> to vector<1x48x256xf32>
    %6 = arith.subf %0, %5 : vector<1x48x256xf32>
    %7 = vector.broadcast %4 : vector<1x1x256xf32> to vector<1x48x256xf32>
    %8 = arith.subf %0, %7 : vector<1x48x256xf32>
    %9 = arith.mulf %6, %8 : vector<1x48x256xf32>
    %cst_3 = arith.constant dense<0.000000e+00> : vector<1x256xf32>
    %10 = vector.multi_reduction <add>, %9, %cst_3 [1] : vector<1x48x256xf32> to vector<1x256xf32>
    %11 = vector.shape_cast %10 : vector<1x256xf32> to vector<1x1x256xf32>
    %cst_4 = arith.constant 4.800000e+01 : f32
    %12 = vector.broadcast %cst_4 : f32 to vector<1x1x256xf32>
    %13 = arith.divf %11, %12 : vector<1x1x256xf32>
    %cst_5 = arith.constant 9.99999974E-6 : f32
    %14 = vector.broadcast %cst_5 : f32 to vector<1x1x256xf32>
    %15 = arith.addf %13, %14 : vector<1x1x256xf32>
    %16 = math.rsqrt %15 : vector<1x1x256xf32>
    %17 = vector.broadcast %16 : vector<1x1x256xf32> to vector<1x48x256xf32>
    %18 = arith.mulf %0, %17 : vector<1x48x256xf32>
    %c0_6 = arith.constant 0 : index
    %c0_7 = arith.constant 0 : index
    %c0_8 = arith.constant 0 : index
    %19 = vector.load %arg3[%c0_6, %c0_7, %c0_8] : memref<1x48x1xf32, #tpu.memory_space<vmem>>, vector<1x48x1xf32>
    %20 = vector.broadcast %19 : vector<1x48x1xf32> to vector<1x48x256xf32>
    %21 = arith.mulf %18, %20 : vector<1x48x256xf32>
    %c0_9 = arith.constant 0 : index
    %c0_10 = arith.constant 0 : index
    %c0_11 = arith.constant 0 : index
    %22 = vector.load %arg4[%c0_9, %c0_10, %c0_11] : memref<1x48x256xf32, #tpu.memory_space<vmem>>, vector<1x48x256xf32>
    tpu.vector_store %arg4[%c0_9, %c0_10, %c0_11], %21 {strides = array<i32>} : memref<1x48x256xf32, #tpu.memory_space<vmem>>, vector<1x48x256xf32>,
    return
  }
  func.func @transform_0(%arg0: i32, %arg1: i32) -> (i32, i32, i32) {
    %c0_i32 = arith.constant 0 : i32
    %c0_i32_0 = arith.constant 0 : i32
    return %arg0, %c0_i32, %arg1 : i32, i32, i32
  }
  func.func @transform_1(%arg0: i32, %arg1: i32) -> (i32, i32, i32) {
    %c0_i32 = arith.constant 0 : i32
    %c0_i32_0 = arith.constant 0 : i32
    %c0_i32_1 = arith.constant 0 : i32
    %c0_i32_2 = arith.constant 0 : i32
    return %c0_i32, %c0_i32_0, %c0_i32_1 : i32, i32, i32
  }
  func.func @transform_2(%arg0: i32, %arg1: i32) -> (i32, i32, i32) {
    %c0_i32 = arith.constant 0 : i32
    %c0_i32_0 = arith.constant 0 : i32
    return %arg0, %c0_i32, %arg1 : i32, i32, i32
  }
}

</mosaic_0001>

<llo_original>
// kernel: biasfree_layernorm.1
$region0: #{biasfree_layernorm.1}
  #allocation0 [shape = 'u32[]', space=smem, size = 0x4, offset = 0x4, fixed_abs, tag = 'smem constant byte address 0x4 - core index']
  #allocation1 [shape = 'u32[144,128]{1,0:T(1,128)}', space=vmem, size = 0x12000, scoped, tag = 'internal scratch']
  %s0 = inlined_call_operand.vmem [shape: f32[1,48,512], index: 0, kind: input, shape index: {}]
  %s1 = inlined_call_operand.vmem [shape: f32[1,48,1], index: 1, kind: input, shape index: {}]
  %s2 = inlined_call_operand.vmem [shape: f32[1,48,512], index: 2, kind: output, shape index: {}]
  %s3 = sld [smem:[#allocation0]]
  $region83: #{biasfree_layernorm.1} parent=0
    _
  %s5 = ssub.s32 1, %s3
  %s6 = scalar_select 0, %s5, %s3
  $region1: #{biasfree_layernorm.1} parent=0
    #allocation2 [shape = 'u8[98304]{0}', space=vmem, size = 0x18000, scoped, tag = 'input window, operand 0']
    #allocation3 [shape = 'u8[98304]{0}', space=vmem, size = 0x18000, scoped, tag = 'output window, operand 0']
    loop: start=0, step=1, limit=4
    $region2: #{biasfree_layernorm.1} parent=1 // loop_pre_header
      _
    $region3: #{biasfree_layernorm.1} parent=1 // loop_header
      %s8 = sphi 0, %s12
      %p9 = scmp.ge.s32.totalorder %s8, 4
      %s15 = sphi 0, %s27
      %s16 = sphi 0, %s23
      %s17 = sphi 0, %s15
      %s18 = sphi 0, %s16
      %s19 = sphi 0, %s17
      %s20 = sphi 0, %s18
      %s32 = sphi 0, %s34
      %s35 = sphi 0, %s32
      %s36 = sphi 0, %s35
      %s52 = sphi 0, %s36
      %s56 = sphi 0, %s56
      %s58 = sphi 0, %s56
      %s59 = sphi 0, %s58
      %s73 = sphi 0, %s59
      %s81 = sphi 0, %s83
      %s84 = sphi 0, %s81
      %s85 = sphi 0, %s84
      %s101 = sphi 0, %s85
    $region4: #{biasfree_layernorm.1} parent=1 // loop_header_branch
      %11 = sbr.rel (%p9) target = $region8
    $region5: #{biasfree_layernorm.1} parent=1 // loop_body
      %s13 = ssub.s32 %s8, 1
      %s14 = ssub.s32 %s8, 2
      %s21 = sadd.s32 1, %s16
      %p22 = scmp.ge.s32.totalorder %s21, 2
      %s23 = scalar_select %p22, 0, %s21
      %s24 = sadd.s32 1, %s15
      %s25 = scalar_select %p22, %s24, %s15
      %p26 = scmp.ge.s32.totalorder %s25, 1
      %s27 = scalar_select %p26, 0, %s25
      %s28 = ssub.s32 %s15, %s27
      %s29 = ssub.s32 %s16, %s23
      %s30 = sor.u32 %s28, %s29
      %p31 = scmp.eq.s32.totalorder %s30, 0
      %s33 = sadd.s32 %s32, 1
      %s34 = scalar_select %p31, %s32, %s33
      %p37 = pneg %p31
      %p38 = scmp.eq.s32.totalorder %s8, 1
      %p39 = por %p37, %p38
      %p40 = scmp.ne.s32.totalorder %s32, %s35
      %p41 = scmp.eq.s32.totalorder %s8, 0
      %p42 = por %p40, %p41
      %p43 = scmp.ne.s32.totalorder %s32, %s35
      %p44 = scmp.eq.s32.totalorder %s13, 1
      %p45 = por %p43, %p44
      %p46 = scmp.ne.s32.totalorder %s35, %s36
      %p47 = scmp.eq.s32.totalorder %s13, 0
      %p48 = por %p46, %p47
      %p49 = scmp.ne.s32.totalorder %s35, %s36
      %p50 = scmp.eq.s32.totalorder %s14, 1
      %p51 = por %p49, %p50
      %p53 = scmp.ne.s32.totalorder %s36, %s52
      %p54 = scmp.eq.s32.totalorder %s14, 0
      %p55 = por %p53, %p54
      %s57 = sadd.s32 %s56, 1
      %p60 = scmp.eq.s32.totalorder %s8, 1
      %p61 = scmp.ne.s32.totalorder %s56, %s58
      %p62 = scmp.eq.s32.totalorder %s8, 0
      %p63 = por %p61, %p62
      %p64 = scmp.ne.s32.totalorder %s56, %s58
      %p65 = scmp.eq.s32.totalorder %s13, 1
      %p66 = por %p64, %p65
      %p67 = scmp.ne.s32.totalorder %s58, %s59
      %p68 = scmp.eq.s32.totalorder %s13, 0
      %p69 = por %p67, %p68
      %p70 = scmp.ne.s32.totalorder %s58, %s59
      %p71 = scmp.eq.s32.totalorder %s14, 1
      %p72 = por %p70, %p71
      %p74 = scmp.ne.s32.totalorder %s59, %s73
      %p75 = scmp.eq.s32.totalorder %s14, 0
      %p76 = por %p74, %p75
      %s77 = ssub.s32 %s15, %s27
      %s78 = ssub.s32 %s16, %s23
      %s79 = sor.u32 %s77, %s78
      %p80 = scmp.eq.s32.totalorder %s79, 0
      %s82 = sadd.s32 %s81, 1
      %s83 = scalar_select %p80, %s81, %s82
      %p86 = pneg %p80
      %p87 = scmp.eq.s32.totalorder %s8, 1
      %p88 = por %p86, %p87
      %p89 = scmp.ne.s32.totalorder %s81, %s84
      %p90 = scmp.eq.s32.totalorder %s8, 0
      %p91 = por %p89, %p90
      %p92 = scmp.ne.s32.totalorder %s81, %s84
      %p93 = scmp.eq.s32.totalorder %s13, 1
      %p94 = por %p92, %p93
      %p95 = scmp.ne.s32.totalorder %s84, %s85
      %p96 = scmp.eq.s32.totalorder %s13, 0
      %p97 = por %p95, %p96
      %p98 = scmp.ne.s32.totalorder %s84, %s85
      %p99 = scmp.eq.s32.totalorder %s14, 1
      %p100 = por %p98, %p99
      %p102 = scmp.ne.s32.totalorder %s85, %s101
      %p103 = scmp.eq.s32.totalorder %s14, 0
      %p104 = por %p102, %p103
      %p105 = scmp.le.s32.totalorder 1, %s8
      %p106 = scmp.lt.s32.totalorder %s8, 3
      %p107 = pnand %p105, %p106
      %p108 = pneg %p107
      // Predicated region
      $region9: #{biasfree_layernorm.1} parent=5 // pred_check
        _
      $region10: #{biasfree_layernorm.1} parent=5 // pred_check_branch
        %110 = sbr.rel (%p107) target = $region12
      $region11: #{biasfree_layernorm.1} parent=5 // pred_region
        %s111 = ssub.s32 %s8, 1
        // Predicated region
        $region13: #{biasfree_layernorm.1} parent=11 // pred_check
          %p112 = pneg %p69
        $region14: #{biasfree_layernorm.1} parent=11 // pred_check_branch
          %114 = sbr.rel (%p112) target = $region16
        $region15: #{biasfree_layernorm.1} parent=11 // pred_region
          _
        $region16: #{biasfree_layernorm.1} parent=11 // pred_fallthru
          _
      $region12: #{biasfree_layernorm.1} parent=5 // pred_fallthru
        _
      %p115 = scmp.lt.s32.totalorder %s8, 2
      // Predicated region
      $region17: #{biasfree_layernorm.1} parent=5 // pred_check
        %p116 = pneg %p115
      $region18: #{biasfree_layernorm.1} parent=5 // pred_check_branch
        %118 = sbr.rel (%p116) target = $region20
      $region19: #{biasfree_layernorm.1} parent=5 // pred_region
        // Predicated region
        $region21: #{biasfree_layernorm.1} parent=19 // pred_check
          %p119 = pneg %p42
        $region22: #{biasfree_layernorm.1} parent=19 // pred_check_branch
          %121 = sbr.rel (%p119) target = $region24
        $region23: #{biasfree_layernorm.1} parent=19 // pred_region
          %s122 = sand.u32 %s32, 1
          %s123 = sand.u32 %s32, 1
          %s124 = smul.addr %s123, 96
          %s125 = scalar_lea.vmem [#allocation2], %s124
          %s126 = smul.u32 2, %s16
          %s127 = smul.addr %s15, 24
          %s128 = sadd.s32 %s126, %s127
          %s129 = smul.addr %s128, 8
          %s130 = scalar_lea.vmem %s0, %s129
          // Predicated region
          $region25: #{biasfree_layernorm.1} parent=23 // pred_check
            _
          $region26: #{biasfree_layernorm.1} parent=23 // pred_check_branch
            %132 = sbr.rel (0) target = $region28
          $region27: #{biasfree_layernorm.1} parent=23 // pred_region
            // Predicated region
            $region29: #{biasfree_layernorm.1} parent=27 // pred_check
              _
            $region30: #{biasfree_layernorm.1} parent=27 // pred_check_branch
              %134 = sbr.rel (0) target = $region32
            $region31: #{biasfree_layernorm.1} parent=27 // pred_region
              loop: start=0, step=1, limit=1
              $region33: #{biasfree_layernorm.1} parent=31 // loop_pre_header
                _
              $region34: #{biasfree_layernorm.1} parent=31 // loop_header
                %s136 = sphi 0, %s140
                %p137 = scmp.ge.s32.totalorder %s136, 1
                %s141 = sphi %s130, %s130
                %s142 = sphi %s125, %s125
              $region35: #{biasfree_layernorm.1} parent=31 // loop_header_branch
                %139 = sbr.rel (%p137) target = $region39
              $region36: #{biasfree_layernorm.1} parent=31 // loop_body
                %v143 = vld [vmem:[%s141] sm:$0xff]
                %144 = vst [vmem:[%s142] sm:$0xff] %v143
                %v145 = vld [vmem:[%s141 + $0x8] sm:$0xff]
                %146 = vst [vmem:[%s142 + $0x8] sm:$0xff] %v145
                %v147 = vld [vmem:[%s141 + $0x20] sm:$0xff]
                %148 = vst [vmem:[%s142 + $0x10] sm:$0xff] %v147
                %v149 = vld [vmem:[%s141 + $0x28] sm:$0xff]
                %150 = vst [vmem:[%s142 + $0x18] sm:$0xff] %v149
                %v151 = vld [vmem:[%s141 + $0x40] sm:$0xff]
                %152 = vst [vmem:[%s142 + $0x20] sm:$0xff] %v151
                %v153 = vld [vmem:[%s141 + $0x48] sm:$0xff]
                %154 = vst [vmem:[%s142 + $0x28] sm:$0xff] %v153
                %v155 = vld [vmem:[%s141 + $0x60] sm:$0xff]
                %156 = vst [vmem:[%s142 + $0x30] sm:$0xff] %v155
                %v157 = vld [vmem:[%s141 + $0x68] sm:$0xff]
                %158 = vst [vmem:[%s142 + $0x38] sm:$0xff] %v157
                %v159 = vld [vmem:[%s141 + $0x80] sm:$0xff]
                %160 = vst [vmem:[%s142 + $0x40] sm:$0xff] %v159
                %v161 = vld [vmem:[%s141 + $0x88] sm:$0xff]
                %162 = vst [vmem:[%s142 + $0x48] sm:$0xff] %v161
                %v163 = vld [vmem:[%s141 + $0xa0] sm:$0xff]
                %164 = vst [vmem:[%s142 + $0x50] sm:$0xff] %v163
                %v165 = vld [vmem:[%s141 + $0xa8] sm:$0xff]
                %166 = vst [vmem:[%s142 + $0x58] sm:$0xff] %v165
              $region37: #{biasfree_layernorm.1} parent=31 // loop_footer
                %s140 = sadd.s32 1, %s136
              $region38: #{biasfree_layernorm.1} parent=31 // loop_footer_branch
                %135 = sbr.rel target = $region34
              $region39: #{biasfree_layernorm.1} parent=31 // loop_exit
                _
            $region32: #{biasfree_layernorm.1} parent=27 // pred_fallthru
              _
            // Predicated region
            $region40: #{biasfree_layernorm.1} parent=27 // pred_check
              _
            $region41: #{biasfree_layernorm.1} parent=27 // pred_check_branch
              %168 = sbr.rel target = $region43
            $region42: #{biasfree_layernorm.1} parent=27 // pred_region
              _
            $region43: #{biasfree_layernorm.1} parent=27 // pred_fallthru
              _
          $region28: #{biasfree_layernorm.1} parent=23 // pred_fallthru
            _
          %169 = vnop
        $region24: #{biasfree_layernorm.1} parent=19 // pred_fallthru
          _
      $region20: #{biasfree_layernorm.1} parent=5 // pred_fallthru
        _
      %p170 = scmp.le.s32.totalorder 1, %s8
      %p171 = scmp.lt.s32.totalorder %s8, 3
      %p172 = pnand %p170, %p171
      %p173 = pneg %p172
      // Predicated region
      $region44: #{biasfree_layernorm.1} parent=5 // pred_check
        _
      $region45: #{biasfree_layernorm.1} parent=5 // pred_check_branch
        %175 = sbr.rel (%p172) target = $region47
      $region46: #{biasfree_layernorm.1} parent=5 // pred_region
        %s176 = ssub.s32 %s8, 1
        %s177 = sand.u32 %s35, 1
        %s178 = sand.u32 %s35, 1
        %s179 = smul.addr %s178, 96
        %s180 = scalar_lea.vmem [#allocation2], %s179
        // Predicated region
        $region48: #{biasfree_layernorm.1} parent=46 // pred_check
          %p181 = pneg %p48
        $region49: #{biasfree_layernorm.1} parent=46 // pred_check_branch
          %183 = sbr.rel (%p181) target = $region51
        $region50: #{biasfree_layernorm.1} parent=46 // pred_region
          _
        $region51: #{biasfree_layernorm.1} parent=46 // pred_fallthru
          _
        %s184 = sand.u32 %s35, 1
        %s185 = sand.u32 %s35, 1
        %s186 = smul.addr %s185, 96
        %s187 = scalar_lea.vmem [#allocation2], %s186
        %p188 = pneg %p48
        %p189 = pneg %p45
        %p190 = pneg %p69
        %p191 = pneg %p66
        %p192 = pneg %p97
        %p193 = pneg %p94
        %s194 = sand.u32 %s84, 1
        %s195 = sand.u32 %s84, 1
        %s196 = smul.addr %s195, 96
        %s197 = scalar_lea.vmem [#allocation3], %s196
        %s198 = smul.u32 2, %s18
        %s199 = smul.u32 2, %s18
        %v200 = vld [vmem:[%s180] sm:$0xff]
        %v201 = vld [vmem:[%s180 + $0x8] sm:$0xff]
        %v202 = vld [vmem:[%s180 + $0x10] sm:$0xff]
        %v203 = vld [vmem:[%s180 + $0x18] sm:$0xff]
        %v204 = vld [vmem:[%s180 + $0x20] sm:$0xff]
        %v205 = vld [vmem:[%s180 + $0x28] sm:$0xff]
        %v206 = vld [vmem:[%s180 + $0x30] sm:$0xff]
        %v207 = vld [vmem:[%s180 + $0x38] sm:$0xff]
        %v208 = vld [vmem:[%s180 + $0x40] sm:$0xff]
        %v209 = vld [vmem:[%s180 + $0x48] sm:$0xff]
        %v210 = vld [vmem:[%s180 + $0x50] sm:$0xff]
        %v211 = vld [vmem:[%s180 + $0x58] sm:$0xff]
        %v212 = vadd.f32 %v200, %v202
        %v213 = vadd.f32 %v212, %v204
        %v214 = vadd.f32 %v213, %v206
        %v215 = vadd.f32 %v214, %v208
        %v216 = vadd.f32 %v215, %v210
        %v217 = vrot.slane %v216, 4
        %v218 = vadd.f32 %v216, %v217
        %v219 = vrot.slane %v218, 2
        %v220 = vadd.f32 %v218, %v219
        %v221 = vrot.slane %v220, 1
        %v222 = vadd.f32 %v220, %v221
        %v223 = vadd.f32 %v201, %v203
        %v224 = vadd.f32 %v223, %v205
        %v225 = vadd.f32 %v224, %v207
        %v226 = vadd.f32 %v225, %v209
        %v227 = vadd.f32 %v226, %v211
        %v228 = vrot.slane %v227, 4
        %v229 = vadd.f32 %v227, %v228
        %v230 = vrot.slane %v229, 2
        %v231 = vadd.f32 %v229, %v230
        %v232 = vrot.slane %v231, 1
        %v233 = vadd.f32 %v231, %v232
        %v234 = vrcp.pop 48.0
        %v235 = vmul.f32 %v222, %v234
        %v236 = vmul.f32 %v233, %v234
        %v237 = vsub.f32 %v200, %v235
        %v238 = vsub.f32 %v201, %v236
        %v239 = vsub.f32 %v202, %v235
        %v240 = vsub.f32 %v203, %v236
        %v241 = vsub.f32 %v204, %v235
        %v242 = vsub.f32 %v205, %v236
        %v243 = vsub.f32 %v206, %v235
        %v244 = vsub.f32 %v207, %v236
        %v245 = vsub.f32 %v208, %v235
        %v246 = vsub.f32 %v209, %v236
        %v247 = vsub.f32 %v210, %v235
        %v248 = vsub.f32 %v211, %v236
        %v249 = vmul.f32 %v237, %v237
        %v250 = vmul.f32 %v238, %v238
        %v251 = vmul.f32 %v239, %v239
        %v252 = vmul.f32 %v240, %v240
        %v253 = vmul.f32 %v241, %v241
        %v254 = vmul.f32 %v242, %v242
        %v255 = vmul.f32 %v243, %v243
        %v256 = vmul.f32 %v244, %v244
        %v257 = vmul.f32 %v245, %v245
        %v258 = vmul.f32 %v246, %v246
        %v259 = vmul.f32 %v247, %v247
        %v260 = vmul.f32 %v248, %v248
        %v261 = vadd.f32 %v249, %v251
        %v262 = vadd.f32 %v261, %v253
        %v263 = vadd.f32 %v262, %v255
        %v264 = vadd.f32 %v263, %v257
        %v265 = vadd.f32 %v264, %v259
        %v266 = vrot.slane %v265, 4
        %v267 = vadd.f32 %v265, %v266
        %v268 = vrot.slane %v267, 2
        %v269 = vadd.f32 %v267, %v268
        %v270 = vrot.slane %v269, 1
        %v271 = vadd.f32 %v269, %v270
        %v272 = vadd.f32 %v250, %v252
        %v273 = vadd.f32 %v272, %v254
        %v274 = vadd.f32 %v273, %v256
        %v275 = vadd.f32 %v274, %v258
        %v276 = vadd.f32 %v275, %v260
        %v277 = vrot.slane %v276, 4
        %v278 = vadd.f32 %v276, %v277
        %v279 = vrot.slane %v278, 2
        %v280 = vadd.f32 %v278, %v279
        %v281 = vrot.slane %v280, 1
        %v282 = vadd.f32 %v280, %v281
        %v283 = vmul.f32 %v271, %v234
        %v284 = vmul.f32 %v282, %v234
        %v285 = vadd.f32 %v283, 1e-05
        %v286 = vadd.f32 %v284, 1e-05
        %v287 = vrsqrt.pop %v285
        %v288 = vrsqrt.pop %v286
        %v289 = vmul.f32 %v200, %v287
        %v290 = vmul.f32 %v201, %v288
        %v291 = vmul.f32 %v202, %v287
        %v292 = vmul.f32 %v203, %v288
        %v293 = vmul.f32 %v204, %v287
        %v294 = vmul.f32 %v205, %v288
        %v295 = vmul.f32 %v206, %v287
        %v296 = vmul.f32 %v207, %v288
        %v297 = vmul.f32 %v208, %v287
        %v298 = vmul.f32 %v209, %v288
        %v299 = vmul.f32 %v210, %v287
        %v300 = vmul.f32 %v211, %v288
        %v301 = vld [vmem:[%s1] sm:$0xff]
        %v302 = vld [vmem:[%s1 + $0x8] sm:$0xff]
        %v303 = vld [vmem:[%s1 + $0x10] sm:$0xff]
        %v304 = vld [vmem:[%s1 + $0x18] sm:$0xff]
        %v305 = vld [vmem:[%s1 + $0x20] sm:$0xff]
        %v306 = vld [vmem:[%s1 + $0x28] sm:$0xff]
        %308 = vset.pattern.permute.xlu0 0
        %309 = vperm.xlu0 %308, %v301
        %v310 = vpop.permute.xlu0 %309
        %313 = vset.pattern.permute.xlu0 0
        %314 = vperm.xlu0 %313, %v302
        %v315 = vpop.permute.xlu0 %314
        %318 = vset.pattern.permute.xlu0 0
        %319 = vperm.xlu0 %318, %v303
        %v320 = vpop.permute.xlu0 %319
        %323 = vset.pattern.permute.xlu0 0
        %324 = vperm.xlu0 %323, %v304
        %v325 = vpop.permute.xlu0 %324
        %328 = vset.pattern.permute.xlu0 0
        %329 = vperm.xlu0 %328, %v305
        %v330 = vpop.permute.xlu0 %329
        %333 = vset.pattern.permute.xlu0 0
        %334 = vperm.xlu0 %333, %v306
        %v335 = vpop.permute.xlu0 %334
        %v337 = vmul.f32 %v289, %v310
        %v338 = vmul.f32 %v290, %v310
        %v339 = vmul.f32 %v291, %v315
        %v340 = vmul.f32 %v292, %v315
        %v341 = vmul.f32 %v293, %v320
        %v342 = vmul.f32 %v294, %v320
        %v343 = vmul.f32 %v295, %v325
        %v344 = vmul.f32 %v296, %v325
        %v345 = vmul.f32 %v297, %v330
        %v346 = vmul.f32 %v298, %v330
        %v347 = vmul.f32 %v299, %v335
        %v348 = vmul.f32 %v300, %v335
        %349 = vst [vmem:[%s197] sm:$0xff] %v337
        %350 = vst [vmem:[%s197 + $0x8] sm:$0xff] %v338
        %351 = vst [vmem:[%s197 + $0x10] sm:$0xff] %v339
        %352 = vst [vmem:[%s197 + $0x18] sm:$0xff] %v340
        %353 = vst [vmem:[%s197 + $0x20] sm:$0xff] %v341
        %354 = vst [vmem:[%s197 + $0x28] sm:$0xff] %v342
        %355 = vst [vmem:[%s197 + $0x30] sm:$0xff] %v343
        %356 = vst [vmem:[%s197 + $0x38] sm:$0xff] %v344
        %357 = vst [vmem:[%s197 + $0x40] sm:$0xff] %v345
        %358 = vst [vmem:[%s197 + $0x48] sm:$0xff] %v346
        %359 = vst [vmem:[%s197 + $0x50] sm:$0xff] %v347
        %360 = vst [vmem:[%s197 + $0x58] sm:$0xff] %v348
        %s361 = sand.u32 %s84, 1
        %s362 = sand.u32 %s84, 1
        %s363 = smul.addr %s362, 96
        %s364 = scalar_lea.vmem [#allocation3], %s363
        // Predicated region
        $region52: #{biasfree_layernorm.1} parent=46 // pred_check
          %p365 = pneg %p94
        $region53: #{biasfree_layernorm.1} parent=46 // pred_check_branch
          %367 = sbr.rel (%p365) target = $region55
        $region54: #{biasfree_layernorm.1} parent=46 // pred_region
          %s368 = smul.u32 2, %s18
          %s369 = smul.addr %s17, 24
          %s370 = sadd.s32 %s368, %s369
          %s371 = smul.addr %s370, 8
          %s372 = scalar_lea.vmem %s2, %s371
          // Predicated region
          $region56: #{biasfree_layernorm.1} parent=54 // pred_check
            _
          $region57: #{biasfree_layernorm.1} parent=54 // pred_check_branch
            %374 = sbr.rel (0) target = $region59
          $region58: #{biasfree_layernorm.1} parent=54 // pred_region
            // Predicated region
            $region60: #{biasfree_layernorm.1} parent=58 // pred_check
              _
            $region61: #{biasfree_layernorm.1} parent=58 // pred_check_branch
              %376 = sbr.rel (0) target = $region63
            $region62: #{biasfree_layernorm.1} parent=58 // pred_region
              loop: start=0, step=1, limit=1
              $region64: #{biasfree_layernorm.1} parent=62 // loop_pre_header
                _
              $region65: #{biasfree_layernorm.1} parent=62 // loop_header
                %s378 = sphi 0, %s382
                %p379 = scmp.ge.s32.totalorder %s378, 1
                %s383 = sphi %s364, %s364
                %s384 = sphi %s372, %s372
              $region66: #{biasfree_layernorm.1} parent=62 // loop_header_branch
                %381 = sbr.rel (%p379) target = $region70
              $region67: #{biasfree_layernorm.1} parent=62 // loop_body
                %v385 = vld [vmem:[%s383] sm:$0xff]
                %386 = vst [vmem:[%s384] sm:$0xff] %v385
                %v387 = vld [vmem:[%s383 + $0x8] sm:$0xff]
                %388 = vst [vmem:[%s384 + $0x8] sm:$0xff] %v387
                %v389 = vld [vmem:[%s383 + $0x10] sm:$0xff]
                %390 = vst [vmem:[%s384 + $0x20] sm:$0xff] %v389
                %v391 = vld [vmem:[%s383 + $0x18] sm:$0xff]
                %392 = vst [vmem:[%s384 + $0x28] sm:$0xff] %v391
                %v393 = vld [vmem:[%s383 + $0x20] sm:$0xff]
                %394 = vst [vmem:[%s384 + $0x40] sm:$0xff] %v393
                %v395 = vld [vmem:[%s383 + $0x28] sm:$0xff]
                %396 = vst [vmem:[%s384 + $0x48] sm:$0xff] %v395
                %v397 = vld [vmem:[%s383 + $0x30] sm:$0xff]
                %398 = vst [vmem:[%s384 + $0x60] sm:$0xff] %v397
                %v399 = vld [vmem:[%s383 + $0x38] sm:$0xff]
                %400 = vst [vmem:[%s384 + $0x68] sm:$0xff] %v399
                %v401 = vld [vmem:[%s383 + $0x40] sm:$0xff]
                %402 = vst [vmem:[%s384 + $0x80] sm:$0xff] %v401
                %v403 = vld [vmem:[%s383 + $0x48] sm:$0xff]
                %404 = vst [vmem:[%s384 + $0x88] sm:$0xff] %v403
                %v405 = vld [vmem:[%s383 + $0x50] sm:$0xff]
                %406 = vst [vmem:[%s384 + $0xa0] sm:$0xff] %v405
                %v407 = vld [vmem:[%s383 + $0x58] sm:$0xff]
                %408 = vst [vmem:[%s384 + $0xa8] sm:$0xff] %v407
              $region68: #{biasfree_layernorm.1} parent=62 // loop_footer
                %s382 = sadd.s32 1, %s378
              $region69: #{biasfree_layernorm.1} parent=62 // loop_footer_branch
                %377 = sbr.rel target = $region65
              $region70: #{biasfree_layernorm.1} parent=62 // loop_exit
                _
            $region63: #{biasfree_layernorm.1} parent=58 // pred_fallthru
              _
            // Predicated region
            $region71: #{biasfree_layernorm.1} parent=58 // pred_check
              _
            $region72: #{biasfree_layernorm.1} parent=58 // pred_check_branch
              %410 = sbr.rel target = $region74
            $region73: #{biasfree_layernorm.1} parent=58 // pred_region
              _
            $region74: #{biasfree_layernorm.1} parent=58 // pred_fallthru
              _
          $region59: #{biasfree_layernorm.1} parent=54 // pred_fallthru
            _
          %411 = vnop
        $region55: #{biasfree_layernorm.1} parent=46 // pred_fallthru
          _
      $region47: #{biasfree_layernorm.1} parent=5 // pred_fallthru
        _
      %p412 = scmp.le.s32.totalorder 2, %s8
      // Predicated region
      $region75: #{biasfree_layernorm.1} parent=5 // pred_check
        %p413 = pneg %p412
      $region76: #{biasfree_layernorm.1} parent=5 // pred_check_branch
        %415 = sbr.rel (%p413) target = $region78
      $region77: #{biasfree_layernorm.1} parent=5 // pred_region
        %s416 = ssub.s32 %s8, 2
        // Predicated region
        $region79: #{biasfree_layernorm.1} parent=77 // pred_check
          %p417 = pneg %p100
        $region80: #{biasfree_layernorm.1} parent=77 // pred_check_branch
          %419 = sbr.rel (%p417) target = $region82
        $region81: #{biasfree_layernorm.1} parent=77 // pred_region
          %s420 = sand.u32 %s85, 1
          %s421 = sand.u32 %s85, 1
          %s422 = smul.addr %s421, 96
          %s423 = scalar_lea.vmem [#allocation3], %s422
        $region82: #{biasfree_layernorm.1} parent=77 // pred_fallthru
          _
      $region78: #{biasfree_layernorm.1} parent=5 // pred_fallthru
        _
    $region6: #{biasfree_layernorm.1} parent=1 // loop_footer
      %s12 = sadd.s32 1, %s8
    $region7: #{biasfree_layernorm.1} parent=1 // loop_footer_branch
      %7 = sbr.rel target = $region3
    $region8: #{biasfree_layernorm.1} parent=1 // loop_exit
      _

</llo_original>
